<compile_context>
chip_gen: v7x
topology: tpu7x:2x2x1
jax: 0.10.0
libtpu: 0.0.40
codegen_flags: <defaults>
</compile_context>

<pallas_src>
import math
import jax
import jax.numpy as jnp
from jax import lax
from jax.experimental import pallas as pl
from jax.experimental.pallas import tpu as pltpu

BN_EPS = 1e-5


def g_i_kernel(x_ref, wt_ref, gb_ref, o_ref):
    x = x_ref[...]                                    # (B, in_f), f32

    # Center x over the batch before the matmul:
    #   (x - mean(x)) @ W == (x @ W) - mean(x @ W) == y - mean(y)
    # so the MXU output is already BN-mean-centered and the linear bias is
    # exactly cancelled. One cheap reduction over (B, in_f) replaces the
    # wider reduction over (B, out_f) plus a dependency stage.
    xc = x - jnp.mean(x, axis=0, keepdims=True)

    # Plain (M,K)x(K,N) contraction; weight was pre-transposed once outside
    # the hot path, so no in-kernel transpose / relayout is emitted.
    yc = jnp.dot(xc, wt_ref[...], preferred_element_type=jnp.float32)  # (B, out_f)

    # Biased batch variance of the centered activations (single reduction).
    var = jnp.mean(yc * yc, axis=0, keepdims=True)    # (1, out_f)

    gb = gb_ref[...]                                  # (2, out_f): row0=gamma, row1=beta
    gamma = gb[0:1, :]
    beta = gb[1:2, :]
    scale = gamma * lax.rsqrt(var + BN_EPS)           # fold BN affine; rsqrt -> EUP
    z = yc * scale + beta

    # sigmoid(z) = 0.5 * tanh(0.5 * z) + 0.5 : one EUP transcendental + one FMA.
    o_ref[...] = (0.5 * jnp.tanh(0.5 * z) + 0.5).astype(o_ref.dtype)


def g_i_prepare_params(weights, bias, gamma, beta):
    """One-time parameter prep (NOT in the per-call hot path).

    weights: (out_f, in_f); bias/gamma/beta: (out_f,).
    `bias` is accepted for interface parity but discarded: under batch-stat
    BatchNorm the mean subtraction cancels it exactly in the forward output.
    """
    del bias
    w_t = jnp.asarray(weights).T                      # (in_f, out_f), transposed once
    gb = jnp.stack([jnp.asarray(gamma), jnp.asarray(beta)], axis=0)  # (2, out_f)
    return w_t, gb


@jax.jit
def g_i_forward(x, w_t, gb):
    """sigmoid(BN_train(x @ W^T + b)) given prepared params (w_t, gb)."""
    B, _ = x.shape
    out_f = w_t.shape[1]
    vmem = pltpu.MemorySpace.VMEM
    return pl.pallas_call(
        g_i_kernel,
        out_shape=jax.ShapeDtypeStruct((B, out_f), x.dtype),
        in_specs=[
            pl.BlockSpec(memory_space=vmem),          # x, whole array
            pl.BlockSpec(memory_space=vmem),          # pre-transposed weight (in_f, out_f)
            pl.BlockSpec(memory_space=vmem),          # packed gamma/beta (2, out_f)
        ],
        out_specs=pl.BlockSpec(memory_space=vmem),
    )(x, w_t, gb)


def reference_forward(x, weights, bias, gamma, beta):
    y = x @ weights.T + bias
    mean = jnp.mean(y, axis=0, keepdims=True)
    var = jnp.mean((y - mean) ** 2, axis=0, keepdims=True)
    y_hat = (y - mean) / jnp.sqrt(var + BN_EPS)
    z = y_hat * gamma + beta
    return jax.nn.sigmoid(z)


if __name__ == "__main__":
    in_features = 32
    out_features = 64
    batch = 8

    key = jax.random.PRNGKey(0)
    k_x, k_w, k_b = jax.random.split(key, 3)

    bound = math.sqrt(3.0 / in_features)
    x = jax.random.normal(k_x, (batch, in_features), dtype=jnp.float32)
    weights = jax.random.uniform(
        k_w, (out_features, in_features), minval=-bound, maxval=bound,
        dtype=jnp.float32)
    bias = jax.random.uniform(
        k_b, (out_features,), minval=-bound, maxval=bound, dtype=jnp.float32)
    # BatchNorm1d affine params at their default init.
    gamma = jnp.ones((out_features,), dtype=jnp.float32)
    beta = jnp.zeros((out_features,), dtype=jnp.float32)

    # One-time parameter prep (off the hot path), then the single-call forward.
    w_t, gb = g_i_prepare_params(weights, bias, gamma, beta)
    out = g_i_forward(x, w_t, gb)
    out = jax.block_until_ready(out)

    ref = reference_forward(x, weights, bias, gamma, beta)
    assert out.shape == (batch, out_features)
    assert jnp.allclose(out, ref, atol=1e-5, rtol=1e-5), "mismatch vs reference"

    print("KERNEL_OK")
</pallas_src>

<mosaic_0001>
module attributes {stable_mosaic.version = 11 : i64} {
  func.func @g_i_kernel(%arg0: memref<8x32xf32, #tpu.memory_space<vmem>>, %arg1: memref<32x64xf32, #tpu.memory_space<vmem>>, %arg2: memref<2x64xf32, #tpu.memory_space<vmem>>, %arg3: memref<8x64xf32, #tpu.memory_space<vmem>>) attributes {dimension_semantics = [], scalar_prefetch = 0 : i64, scratch_operands = 0 : i64, tpu.core_type = #tpu.core_type<tc>} {
    %c0 = arith.constant 0 : index
    %c0_0 = arith.constant 0 : index
    %0 = vector.load %arg0[%c0, %c0_0] : memref<8x32xf32, #tpu.memory_space<vmem>>, vector<8x32xf32>
    %cst = arith.constant dense<0.000000e+00> : vector<32xf32>
    %1 = vector.multi_reduction <add>, %0, %cst [0] : vector<8x32xf32> to vector<32xf32>
    %2 = vector.shape_cast %1 : vector<32xf32> to vector<1x32xf32>
    %cst_1 = arith.constant 8.000000e+00 : f32
    %3 = vector.broadcast %cst_1 : f32 to vector<1x32xf32>
    %4 = arith.divf %2, %3 : vector<1x32xf32>
    %5 = vector.broadcast %4 : vector<1x32xf32> to vector<8x32xf32>
    %6 = arith.subf %0, %5 : vector<8x32xf32>
    %c0_2 = arith.constant 0 : index
    %c0_3 = arith.constant 0 : index
    %7 = vector.load %arg1[%c0_2, %c0_3] : memref<32x64xf32, #tpu.memory_space<vmem>>, vector<32x64xf32>
    %cst_4 = arith.constant dense<0.000000e+00> : vector<8x64xf32>
    %8 = tpu.matmul %6, %7, %cst_4 {dimension_numbers = #tpu.dot_dimension_numbers<[1], [0], [0], [1], [0, 0, 1, 1], [], []>} : vector<8x32xf32>, vector<32x64xf32>, vector<8x64xf32> -> vector<8x64xf32>
    %9 = arith.mulf %8, %8 : vector<8x64xf32>
    %cst_5 = arith.constant dense<0.000000e+00> : vector<64xf32>
    %10 = vector.multi_reduction <add>, %9, %cst_5 [0] : vector<8x64xf32> to vector<64xf32>
    %11 = vector.shape_cast %10 : vector<64xf32> to vector<1x64xf32>
    %cst_6 = arith.constant 8.000000e+00 : f32
    %12 = vector.broadcast %cst_6 : f32 to vector<1x64xf32>
    %13 = arith.divf %11, %12 : vector<1x64xf32>
    %c0_7 = arith.constant 0 : index
    %c0_8 = arith.constant 0 : index
    %14 = vector.load %arg2[%c0_7, %c0_8] : memref<2x64xf32, #tpu.memory_space<vmem>>, vector<2x64xf32>
    %15 = vector.extract_strided_slice %14 {offsets = [0, 0], sizes = [1, 64], strides = [1, 1]} : vector<2x64xf32> to vector<1x64xf32>
    %16 = vector.extract_strided_slice %14 {offsets = [1, 0], sizes = [1, 64], strides = [1, 1]} : vector<2x64xf32> to vector<1x64xf32>
    %cst_9 = arith.constant 9.99999974E-6 : f32
    %17 = vector.broadcast %cst_9 : f32 to vector<1x64xf32>
    %18 = arith.addf %13, %17 : vector<1x64xf32>
    %19 = math.rsqrt %18 : vector<1x64xf32>
    %20 = arith.mulf %15, %19 : vector<1x64xf32>
    %21 = vector.broadcast %20 : vector<1x64xf32> to vector<8x64xf32>
    %22 = arith.mulf %8, %21 : vector<8x64xf32>
    %23 = vector.broadcast %16 : vector<1x64xf32> to vector<8x64xf32>
    %24 = arith.addf %22, %23 : vector<8x64xf32>
    %cst_10 = arith.constant 5.000000e-01 : f32
    %25 = vector.broadcast %cst_10 : f32 to vector<8x64xf32>
    %26 = arith.mulf %25, %24 : vector<8x64xf32>
    %27 = math.tanh %26 : vector<8x64xf32>
    %cst_11 = arith.constant 5.000000e-01 : f32
    %28 = vector.broadcast %cst_11 : f32 to vector<8x64xf32>
    %29 = arith.mulf %28, %27 : vector<8x64xf32>
    %cst_12 = arith.constant 5.000000e-01 : f32
    %30 = vector.broadcast %cst_12 : f32 to vector<8x64xf32>
    %31 = arith.addf %29, %30 : vector<8x64xf32>
    %c0_13 = arith.constant 0 : index
    %c0_14 = arith.constant 0 : index
    %32 = vector.load %arg3[%c0_13, %c0_14] : memref<8x64xf32, #tpu.memory_space<vmem>>, vector<8x64xf32>
    tpu.vector_store %arg3[%c0_13, %c0_14], %31 {strides = array<i32>} : memref<8x64xf32, #tpu.memory_space<vmem>>, vector<8x64xf32>,
    return
  }
}

</mosaic_0001>

<llo_original>
// kernel: g_i_forward.1
$region0: #{g_i_forward.1}
  #allocation0 [shape = 'u32[]', space=smem, size = 0x4, offset = 0x4, fixed_abs, tag = 'smem constant byte address 0x4 - core index']
  #allocation1 [shape = 'u32[144,128]{1,0:T(1,128)}', space=vmem, size = 0x12000, scoped, tag = 'internal scratch']
  %s0 = inlined_call_operand.hbm [shape: f32[8,32], index: 0, kind: input, shape index: {}]
  %s1 = inlined_call_operand.hbm [shape: f32[32,64], index: 1, kind: input, shape index: {}]
  %s2 = inlined_call_operand.vmem [shape: f32[2,64], index: 2, kind: input, shape index: {}]
  %s3 = inlined_call_operand.hbm [shape: f32[8,64], index: 3, kind: output, shape index: {}]
  %s4 = sld [smem:[#allocation0]]
  $region30: #{g_i_forward.1} parent=0
    _
  %s6 = ssub.s32 1, %s4
  %s7 = scalar_select 0, %s6, %s4
  $region1: #{g_i_forward.1} parent=0
    #allocation2 [shape = 'u8[4096]{0}', space=vmem, size = 0x1000, scoped, tag = 'input window, operand 0, single buffered']
    #allocation3 [shape = 's32[1]{0}', space=sflag, size = 0x4, scoped, tag = 'scoped memory for g_i_forward.1']
    #allocation4 [shape = 's32[1]{0}', space=sflag, size = 0x4, scoped, tag = 'scoped memory for g_i_forward.1']
    #allocation5 [shape = 'u8[16384]{0}', space=vmem, size = 0x4000, scoped, tag = 'input window, operand 1, single buffered']
    #allocation6 [shape = 's32[1]{0}', space=sflag, size = 0x4, scoped, tag = 'scoped memory for g_i_forward.1']
    #allocation7 [shape = 'u8[4096]{0}', space=vmem, size = 0x1000, scoped, tag = 'output window, operand 0, single buffered']
    %8 = vsyncpa [#allocation3], 0
    %9 = vsyncpa [#allocation6], 0
    %10 = vsyncpa [#allocation4], 0
    // Predicated region
    $region2: #{g_i_forward.1} parent=1 // pred_check
      _
    $region3: #{g_i_forward.1} parent=1 // pred_check_branch
      %12 = sbr.rel (0) target = $region5
    $region4: #{g_i_forward.1} parent=1 // pred_region
      %s14 = ssub.s32 128, 128
      %15 = vsyncadd [#allocation3], %s14
      %s17 = sshll.u32 [#allocation2], 4
      %s18 = int_to_ptr.vmem [resolvable:$true] %s17
      %20 = dma.hbm_to_vmem [thread:$0]  %s0, 128, %s18, [#allocation3]
    $region5: #{g_i_forward.1} parent=1 // pred_fallthru
      _
    // Predicated region
    $region6: #{g_i_forward.1} parent=1 // pred_check
      _
    $region7: #{g_i_forward.1} parent=1 // pred_check_branch
      %22 = sbr.rel (0) target = $region9
    $region8: #{g_i_forward.1} parent=1 // pred_region
      %s24 = ssub.s32 512, 512
      %25 = vsyncadd [#allocation6], %s24
      %s26 = sshll.u32 [#allocation5], 4
      %s27 = int_to_ptr.vmem [resolvable:$true] %s26
      %32 = dma.hbm_to_vmem [thread:$0]  %s1, 512, %s27, [#allocation6], 128, 128, 8
    $region9: #{g_i_forward.1} parent=1 // pred_fallthru
      _
    // Predicated region
    $region10: #{g_i_forward.1} parent=1 // pred_check
      _
    $region11: #{g_i_forward.1} parent=1 // pred_check_branch
      %34 = sbr.rel (0) target = $region13
    $region12: #{g_i_forward.1} parent=1 // pred_region
      _
    $region13: #{g_i_forward.1} parent=1 // pred_fallthru
      _
    // Predicated region
    $region14: #{g_i_forward.1} parent=1 // pred_check
      _
    $region15: #{g_i_forward.1} parent=1 // pred_check_branch
      %36 = sbr.rel (0) target = $region17
    $region16: #{g_i_forward.1} parent=1 // pred_region
      %37 = dma.done [#allocation3], 128
    $region17: #{g_i_forward.1} parent=1 // pred_fallthru
      _
    // Predicated region
    $region18: #{g_i_forward.1} parent=1 // pred_check
      _
    $region19: #{g_i_forward.1} parent=1 // pred_check_branch
      %39 = sbr.rel (0) target = $region21
    $region20: #{g_i_forward.1} parent=1 // pred_region
      %40 = dma.done [#allocation6], 512
    $region21: #{g_i_forward.1} parent=1 // pred_fallthru
      _
    %v41 = vld [vmem:[#allocation2] sm:$0xff]
    %vm42 = vcmask 261120
    %v43 = vsel %vm42, %v41, 0.0
    %v44 = vrot.slane %v43, 4
    %v45 = vadd.f32 %v43, %v44
    %v46 = vrot.slane %v45, 2
    %v47 = vadd.f32 %v45, %v46
    %v48 = vrot.slane %v47, 1
    %v49 = vadd.f32 %v47, %v48
    %v50 = vrcp.pop 8.0
    %v51 = vmul.f32 %v49, %v50
    %v52 = vsub.f32 %v41, %v51
    %v53 = vld [vmem:[#allocation5] sm:$0xff]
    %v54 = vld [vmem:[#allocation5 + $0x8] sm:$0xff]
    %v55 = vld [vmem:[#allocation5 + $0x10] sm:$0xff]
    %v56 = vld [vmem:[#allocation5 + $0x18] sm:$0xff]
    %v58 = vsel %vm42, %v52, 0
    %60 = vmatprep.subr.mxu0 0.0
    %61 = vmatpush1.msra.mxu0 %v53
    %62 = vmatprep.subr.mxu0 0.0
    %63 = vmatpush1.msra.mxu0 %v54
    %64 = vmatprep.subr.mxu0 0.0
    %65 = vmatpush1.msra.mxu0 %v55
    %66 = vmatprep.subr.mxu0 0.0
    %67 = vmatpush1.msra.mxu0 %v56
    %68 = vmatprep.subr.mxu0 0.0
    %69 = vmatpush1.msra.mxu0 0.0
    %70 = vmatprep.subr.mxu0 0.0
    %71 = vmatpush1.msra.mxu0 0.0
    %72 = vmatprep.subr.mxu0 0.0
    %73 = vmatpush1.msra.mxu0 0.0
    %74 = vmatprep.subr.mxu0 0.0
    %75 = vmatpush1.msra.mxu0 0.0
    %76 = vmatprep.subr.mxu0 0.0
    %77 = vmatpush1.msra.mxu0 0.0
    %78 = vmatprep.subr.mxu0 0.0
    %79 = vmatpush1.msra.mxu0 0.0
    %80 = vmatprep.subr.mxu0 0.0
    %81 = vmatpush1.msra.mxu0 0.0
    %82 = vmatprep.subr.mxu0 0.0
    %83 = vmatpush1.msra.mxu0 0.0
    %84 = vmatprep.subr.mxu0 0.0
    %85 = vmatpush1.msra.mxu0 0.0
    %86 = vmatprep.subr.mxu0 0.0
    %87 = vmatpush1.msra.mxu0 0.0
    %88 = vmatprep.subr.mxu0 0.0
    %89 = vmatpush1.msra.mxu0 0.0
    %90 = vmatprep.subr.mxu0 0.0
    %91 = vmatpush1.msra.mxu0 0.0
    %92 = vmatprep.subr.mxu0 0.0
    %93 = vmatpush1.msra.mxu0 0.0
    %94 = vmatprep.subr.mxu0 0.0
    %95 = vmatpush1.msra.mxu0 0.0
    %96 = vmatprep.subr.mxu0 0.0
    %97 = vmatpush1.msra.mxu0 0.0
    %98 = vmatprep.subr.mxu0 0.0
    %99 = vmatpush1.msra.mxu0 0.0
    %100 = vmatprep.subr.mxu0 0.0
    %101 = vmatpush1.msra.mxu0 0.0
    %102 = vmatprep.subr.mxu0 0.0
    %103 = vmatpush1.msra.mxu0 0.0
    %104 = vmatprep.subr.mxu0 0.0
    %105 = vmatpush1.msra.mxu0 0.0
    %106 = vmatprep.subr.mxu0 0.0
    %107 = vmatpush1.msra.mxu0 0.0
    %108 = vmatprep.subr.mxu0 0.0
    %109 = vmatpush1.msra.mxu0 0.0
    %110 = vmatprep.subr.mxu0 0.0
    %111 = vmatpush1.msra.mxu0 0.0
    %112 = vmatprep.subr.mxu0 0.0
    %113 = vmatpush1.msra.mxu0 0.0
    %114 = vmatprep.subr.mxu0 0.0
    %115 = vmatpush1.msra.mxu0 0.0
    %116 = vmatprep.subr.mxu0 0.0
    %117 = vmatpush1.msra.mxu0 0.0
    %118 = vmatprep.subr.mxu0 0.0
    %119 = vmatpush1.msra.mxu0 0.0
    %120 = vmatprep.subr.mxu0 0.0
    %121 = vmatpush1.msra.mxu0 0.0
    %122 = vmatprep.subr.mxu0 0.0
    %123 = vmatpush1.msra.mxu0 0.0
    %124 = vmatprep.mubr.f32.mxu0 0.0
    %125 = vmatmul.mubr.f32.gmra.mrb[0].mxu0 %v58
    %v126 = vpop.f32.mrb[0].mxu0
    %v127 = vadd.f32 0.0, %v126
    %v128 = vpop.f32.mrb[0].mxu0
    %129 = vdwg.mxu0
    %v130 = vmul.f32 %v127, %v127
    %vm131 = vcmask 523264
    %v132 = vsel %vm131, %v130, 0.0
    %v133 = vrot.slane %v132, 4
    %v134 = vadd.f32 %v132, %v133
    %v135 = vrot.slane %v134, 2
    %v136 = vadd.f32 %v134, %v135
    %v137 = vrot.slane %v136, 1
    %v138 = vadd.f32 %v136, %v137
    %v139 = vmul.f32 %v138, %v50
    %v140 = vld [vmem:[%s2] sm:$0x3]
    %v141 = vadd.f32 %v139, 1e-05
    %v142 = vrsqrt.pop %v141
    %v143 = vmul.f32 %v140, %v142
    %v144 = vlaneseq
    %v145 = vshrl.u32 %v144, 7
    %v146 = vsub.s32 0, %v145
    %v147 = vrot.slane %v143, %v146
    %v148 = vmul.f32 %v127, %v147
    %v149 = vlaneseq
    %v150 = vshrl.u32 %v149, 7
    %v151 = vsub.s32 1, %v150
    %v152 = vrot.slane %v140, %v151
    %v153 = vadd.f32 %v148, %v152
    %v154 = vmul.f32 %v153, 0.5
    %v155 = vtanh.pop %v154
    %v156 = vmul.f32 %v155, 0.5
    %v157 = vadd.f32 %v156, 0.5
    %158 = vst.msk [vmem:[#allocation7] sm:$0xff] %vm131, %v157
    // Predicated region
    $region22: #{g_i_forward.1} parent=1 // pred_check
      _
    $region23: #{g_i_forward.1} parent=1 // pred_check_branch
      %160 = sbr.rel (0) target = $region25
    $region24: #{g_i_forward.1} parent=1 // pred_region
      %s162 = ssub.s32 128, 128
      %163 = vsyncadd [#allocation4], %s162
      %s165 = sshll.u32 [#allocation7], 4
      %s166 = int_to_ptr.vmem [resolvable:$true] %s165
      %168 = dma.vmem_to_hbm [thread:$0]  %s166, 128, %s3, [#allocation4]
    $region25: #{g_i_forward.1} parent=1 // pred_fallthru
      _
    // Predicated region
    $region26: #{g_i_forward.1} parent=1 // pred_check
      _
    $region27: #{g_i_forward.1} parent=1 // pred_check_branch
      %170 = sbr.rel (0) target = $region29
    $region28: #{g_i_forward.1} parent=1 // pred_region
      %171 = dma.done [#allocation4], 128
    $region29: #{g_i_forward.1} parent=1 // pred_fallthru
      _
    %172 = vsyncpa [#allocation3], 1
    %173 = vsyncpa [#allocation6], 1
    %174 = vsyncpa [#allocation4], 1

</llo_original>
